<compile_context>
chip_gen: v7x
topology: tpu7x:2x2x1
jax: 0.10.0
libtpu: 0.0.40
codegen_flags: <defaults>
</compile_context>

<pallas_src>
import jax
import jax.numpy as jnp
from jax.experimental import pallas as pl
from jax.experimental.pallas import tpu as pltpu


def _round_up(a: int, b: int) -> int:
    return ((a + b - 1) // b) * b


# ---------------------------------------------------------------------------
# Branch (A): MLP head.  Everything is computed in "transposed" layout so the
# sample axis sits on lanes: x^T is (features, N), the hidden activation is
# (h_dim, tile_N) and the output tile is a lane-dense (1, tile_N) row.
# ---------------------------------------------------------------------------
def _mlp_kernel(scal_ref, xT_ref, w1x_ref, w1b_ref, b1_ref, bns_ref, bnb_ref,
                w2_ref, oT_ref):
    paramb = scal_ref[0]
    alpha = scal_ref[1]          # PReLU (single shared parameter)
    b2 = scal_ref[2]             # bias of the final Linear(h_dim, 1)

    xT = xT_ref[...]                                            # (k_pad, tN) f32

    # First Linear with the concatenated paramb column folded into the bias:
    #   cat(x, b) @ W1^T + b1  ==  x @ W1[:, :fin]^T + (b1 + b * W1[:, fin])
    bias_col = b1_ref[...] + paramb * w1b_ref[...]              # (h_dim, 1)
    hT = jnp.dot(w1x_ref[...], xT,
                 preferred_element_type=jnp.float32) + bias_col  # (h_dim, tN)

    # BatchNorm1d (eval mode, pre-folded to scale/shift) + PReLU.
    hT = hT * bns_ref[...] + bnb_ref[...]
    hT = jnp.where(hT > 0, hT, alpha * hT)

    # Second Linear (h_dim -> 1): weighted cross-sublane reduce keeps the
    # output lane-dense as a (1, tN) row.
    outT = jnp.sum(hT * w2_ref[...], axis=0, keepdims=True) + b2
    oT_ref[...] = outT.astype(oT_ref.dtype)


def omega_mlp(x, paramb, w1, b1, bn, prelu_alpha, w2, b2, *, lane_tile=1024):
    """Branch (A): mlp(cat(x, paramb)).  x: (N, in_dim - 1) -> (N, 1).

    w1: (h_dim, in_dim) torch layout, b1: (h_dim,), w2: (1, h_dim), b2 scalar.
    bn = (gamma, beta, running_mean, running_var, eps) or None (norm=False).
    lane_tile must be a multiple of 128.
    """
    f32 = jnp.float32
    N, fin = x.shape
    h_dim, in_dim = w1.shape
    assert in_dim == fin + 1, "Linear expects cat(x, paramb) of width in_dim"

    # Lane-dense padded layout: samples on lanes, features on sublanes.
    n_pad = _round_up(max(N, 128), 128)
    t_n = min(lane_tile, n_pad)
    n_pad = _round_up(n_pad, t_n)
    k_pad = _round_up(fin, 8)

    xT = jnp.zeros((k_pad, n_pad), f32).at[:fin, :N].set(x.T.astype(f32))
    w1x = jnp.zeros((h_dim, k_pad), f32).at[:, :fin].set(w1[:, :fin].astype(f32))
    w1b = w1[:, fin:].astype(f32).reshape(h_dim, 1)
    b1c = b1.astype(f32).reshape(h_dim, 1)

    if bn is not None:                  # fold eval-mode BN into scale / shift
        gamma, beta, rmean, rvar, eps = bn
        scale = gamma.astype(f32) / jnp.sqrt(rvar.astype(f32) + eps)
        shift = beta.astype(f32) - rmean.astype(f32) * scale
    else:
        scale = jnp.ones((h_dim,), f32)
        shift = jnp.zeros((h_dim,), f32)
    scale = scale.reshape(h_dim, 1)
    shift = shift.reshape(h_dim, 1)
    w2c = w2.astype(f32).reshape(h_dim, 1)

    scalars = jnp.stack([jnp.asarray(paramb, f32).reshape(()),
                         jnp.asarray(prelu_alpha, f32).reshape(()),
                         jnp.asarray(b2, f32).reshape(())])

    def const_spec(shape):
        return pl.BlockSpec(shape, lambda i: (0, 0))

    outT = pl.pallas_call(
        _mlp_kernel,
        out_shape=jax.ShapeDtypeStruct((1, n_pad), x.dtype),
        grid=(n_pad // t_n,),
        in_specs=[
            pl.BlockSpec(memory_space=pltpu.MemorySpace.SMEM),   # scalars
            pl.BlockSpec((k_pad, t_n), lambda i: (0, i)),        # x^T tile
            const_spec((h_dim, k_pad)),                          # W1[:, :fin]
            const_spec((h_dim, 1)),                              # W1[:, fin]
            const_spec((h_dim, 1)),                              # b1
            const_spec((h_dim, 1)),                              # BN scale
            const_spec((h_dim, 1)),                              # BN shift
            const_spec((h_dim, 1)),                              # W2
        ],
        out_specs=pl.BlockSpec((1, t_n), lambda i: (0, i)),
        compiler_params=pltpu.CompilerParams(
            dimension_semantics=("parallel",)),
    )(scalars, xT, w1x, w1b, b1c, scale, shift, w2c)

    # (1, n_pad) and (N, 1) share the same flat order -> reshape only.
    return outT.reshape(-1)[:N].reshape(N, 1)


# ---------------------------------------------------------------------------
# Branch (B): Linear(in_dim, 1)(x ** paramb), transposed/lane-dense.
# ---------------------------------------------------------------------------
def _pow_linear_kernel(scal_ref, xT_ref, w_ref, oT_ref):
    b = scal_ref[0]
    bias = scal_ref[1]
    p = jnp.power(xT_ref[...], b)                                # (k_pad, tN)
    outT = jnp.sum(p * w_ref[...], axis=0, keepdims=True) + bias
    oT_ref[...] = outT.astype(oT_ref.dtype)


def omega_pow_linear(x, paramb, w, bias, *, lane_tile=1024):
    """Branch (B): Linear(in_dim, 1)(x ** paramb).  x: (N, in_dim) -> (N, 1).

    w: (1, in_dim) torch layout, bias scalar.  lane_tile multiple of 128.
    """
    f32 = jnp.float32
    N, in_dim = x.shape
    n_pad = _round_up(max(N, 128), 128)
    t_n = min(lane_tile, n_pad)
    n_pad = _round_up(n_pad, t_n)
    k_pad = _round_up(in_dim, 8)

    # Pad with 1.0 (pow stays finite) and zero the padded weight rows so the
    # padding never contributes to the reduction.
    xT = jnp.ones((k_pad, n_pad), f32).at[:in_dim, :N].set(x.T.astype(f32))
    wc = jnp.zeros((k_pad, 1), f32).at[:in_dim, 0].set(
        w.astype(f32).reshape(-1))
    scalars = jnp.stack([jnp.asarray(paramb, f32).reshape(()),
                         jnp.asarray(bias, f32).reshape(())])

    outT = pl.pallas_call(
        _pow_linear_kernel,
        out_shape=jax.ShapeDtypeStruct((1, n_pad), x.dtype),
        grid=(n_pad // t_n,),
        in_specs=[
            pl.BlockSpec(memory_space=pltpu.MemorySpace.SMEM),   # paramb, bias
            pl.BlockSpec((k_pad, t_n), lambda i: (0, i)),        # x^T tile
            pl.BlockSpec((k_pad, 1), lambda i: (0, 0)),          # weight column
        ],
        out_specs=pl.BlockSpec((1, t_n), lambda i: (0, i)),
        compiler_params=pltpu.CompilerParams(
            dimension_semantics=("parallel",)),
    )(scalars, xT, wc)

    return outT.reshape(-1)[:N].reshape(N, 1)


# ---------------------------------------------------------------------------
# Branch (C): elementwise x ** paramb on a lane-dense (rows, 128) slab.
# ---------------------------------------------------------------------------
def _pow_kernel(b_ref, x_ref, o_ref):
    o_ref[...] = jnp.power(x_ref[...], b_ref[0]).astype(o_ref.dtype)


def omega_pow(x, paramb, *, row_tile=512):
    """Branch (C): elementwise x ** paramb, any input shape."""
    f32 = jnp.float32
    orig_shape, orig_dtype = x.shape, x.dtype
    flat = x.reshape(-1).astype(f32)
    n = flat.shape[0]
    lanes = 128
    rows = max(pl.cdiv(n, lanes), 1)
    t_rows = _round_up(min(row_tile, _round_up(rows, 8)), 8)
    rows_pad = _round_up(rows, t_rows)
    flat = jnp.pad(flat, (0, rows_pad * lanes - n), constant_values=1.0)
    slab = flat.reshape(rows_pad, lanes)
    b_arr = jnp.asarray(paramb, f32).reshape(1)

    out = pl.pallas_call(
        _pow_kernel,
        out_shape=jax.ShapeDtypeStruct((rows_pad, lanes), orig_dtype),
        grid=(rows_pad // t_rows,),
        in_specs=[pl.BlockSpec(memory_space=pltpu.MemorySpace.SMEM),
                  pl.BlockSpec((t_rows, lanes), lambda i: (i, 0))],
        out_specs=pl.BlockSpec((t_rows, lanes), lambda i: (i, 0)),
        compiler_params=pltpu.CompilerParams(
            dimension_semantics=("parallel",)),
    )(b_arr, slab)

    return out.reshape(-1)[:n].reshape(orig_shape)


def omega_forward(x, params, *, in_dim=1, h_dim=0, norm=True):
    """Mirrors Omega.forward branch selection."""
    if h_dim > 0 and in_dim > 1:
        return omega_mlp(x, params["paramb"], params["w1"], params["b1"],
                         params["bn"] if norm else None,
                         params["prelu_alpha"], params["w2"], params["b2"])
    elif in_dim > 1:
        return omega_pow_linear(x, params["paramb"], params["w"], params["bias"])
    return omega_pow(x, params["paramb"])


# ---------------------------------------------------------------------------
# Plain-JAX references (torch semantics).
# ---------------------------------------------------------------------------
def _ref_mlp(x, paramb, w1, b1, bn, alpha, w2, b2):
    N = x.shape[0]
    omg_in = jnp.concatenate([x, jnp.full((N, 1), paramb, x.dtype)], axis=1)
    h = omg_in @ w1.T + b1
    if bn is not None:
        gamma, beta, rmean, rvar, eps = bn
        h = (h - rmean) / jnp.sqrt(rvar + eps) * gamma + beta
    h = jnp.where(h > 0, h, alpha * h)
    return h @ w2.T + b2


def _ref_pow_linear(x, paramb, w, bias):
    return jnp.power(x, paramb) @ w.T + bias


if __name__ == "__main__":
    key = jax.random.PRNGKey(0)
    ks = jax.random.split(key, 12)

    # -------- Branch (A): in_dim=4, h_dim=32, norm=True --------
    N_a, in_dim, h_dim = 2048, 4, 32
    fin = in_dim - 1
    x_a = jax.random.normal(ks[0], (N_a, fin), jnp.float32)
    paramb_a = jnp.float32(1.0)                     # initb default
    w1 = 0.3 * jax.random.normal(ks[1], (h_dim, in_dim), jnp.float32)
    b1 = 0.1 * jax.random.normal(ks[2], (h_dim,), jnp.float32)
    gamma = 0.5 + jnp.abs(jax.random.normal(ks[3], (h_dim,), jnp.float32))
    beta = 0.1 * jax.random.normal(ks[4], (h_dim,), jnp.float32)
    rmean = 0.1 * jax.random.normal(ks[5], (h_dim,), jnp.float32)
    rvar = 0.5 + jnp.abs(jax.random.normal(ks[6], (h_dim,), jnp.float32))
    eps = 1e-5
    alpha = jnp.float32(0.25)                       # PReLU default init
    w2 = 0.3 * jax.random.normal(ks[7], (1, h_dim), jnp.float32)
    b2 = jnp.float32(0.05)

    params_a = dict(paramb=paramb_a, w1=w1, b1=b1,
                    bn=(gamma, beta, rmean, rvar, eps),
                    prelu_alpha=alpha, w2=w2, b2=b2)
    out_a = jax.block_until_ready(
        omega_forward(x_a, params_a, in_dim=in_dim, h_dim=h_dim, norm=True))
    ref_a = _ref_mlp(x_a, paramb_a, w1, b1, (gamma, beta, rmean, rvar, eps),
                     alpha, w2, b2)
    assert out_a.shape == (N_a, 1)
    assert jnp.allclose(out_a, ref_a, atol=2e-4, rtol=2e-4)

    # -------- Branch (B): in_dim=4, h_dim=0 --------
    N_b = 512
    x_b = 0.1 + jnp.abs(jax.random.normal(ks[8], (N_b, 4), jnp.float32))
    paramb_b = jnp.float32(1.3)
    w_b = 0.5 * jax.random.normal(ks[9], (1, 4), jnp.float32)
    bias_b = jnp.float32(-0.2)
    out_b = jax.block_until_ready(
        omega_pow_linear(x_b, paramb_b, w_b, bias_b, lane_tile=256))
    ref_b = _ref_pow_linear(x_b, paramb_b, w_b, bias_b)
    assert out_b.shape == (N_b, 1)
    assert jnp.allclose(out_b, ref_b, atol=1e-4, rtol=1e-4)

    # -------- Branch (C): default in_dim=1, h_dim=0 --------
    x_c = 0.1 + jnp.abs(jax.random.normal(ks[10], (40, 37), jnp.float32))
    paramb_c = jnp.float32(1.3)
    out_c = jax.block_until_ready(omega_pow(x_c, paramb_c, row_tile=8))
    ref_c = jnp.power(x_c, paramb_c)
    assert out_c.shape == x_c.shape
    assert jnp.allclose(out_c, ref_c, atol=1e-4, rtol=1e-4)

    print("KERNEL_OK")
</pallas_src>

<mosaic_0001>
module attributes {stable_mosaic.version = 11 : i64} {
  func.func @_mlp_kernel(%arg0: i32, %arg1: memref<3xf32, #tpu.memory_space<smem>>, %arg2: memref<8x1024xf32, #tpu.memory_space<vmem>>, %arg3: memref<32x8xf32, #tpu.memory_space<vmem>>, %arg4: memref<32x1xf32, #tpu.memory_space<vmem>>, %arg5: memref<32x1xf32, #tpu.memory_space<vmem>>, %arg6: memref<32x1xf32, #tpu.memory_space<vmem>>, %arg7: memref<32x1xf32, #tpu.memory_space<vmem>>, %arg8: memref<32x1xf32, #tpu.memory_space<vmem>>, %arg9: memref<1x1024xf32, #tpu.memory_space<vmem>>) attributes {dimension_semantics = [#tpu.dimension_semantics<parallel>], iteration_bounds = array<i64: 2>, scalar_prefetch = 0 : i64, scratch_operands = 0 : i64, tpu.core_type = #tpu.core_type<tc>, window_params = [{transform_indices = @transform_0, window_bounds = array<i64: 3>}, {transform_indices = @transform_1, window_bounds = array<i64: 8, 1024>}, {pipeline_mode = #tpu.pipeline_mode<synchronous>, transform_indices = @transform_2, window_bounds = array<i64: 32, 8>}, {pipeline_mode = #tpu.pipeline_mode<synchronous>, transform_indices = @transform_3, window_bounds = array<i64: 32, 1>}, {pipeline_mode = #tpu.pipeline_mode<synchronous>, transform_indices = @transform_4, window_bounds = array<i64: 32, 1>}, {pipeline_mode = #tpu.pipeline_mode<synchronous>, transform_indices = @transform_5, window_bounds = array<i64: 32, 1>}, {pipeline_mode = #tpu.pipeline_mode<synchronous>, transform_indices = @transform_6, window_bounds = array<i64: 32, 1>}, {pipeline_mode = #tpu.pipeline_mode<synchronous>, transform_indices = @transform_7, window_bounds = array<i64: 32, 1>}, {transform_indices = @transform_8, window_bounds = array<i64: 1, 1024>}]} {
    %c0 = arith.constant 0 : index
    %0 = memref.load %arg1[%c0] : memref<3xf32, #tpu.memory_space<smem>>
    %c1 = arith.constant 1 : index
    %1 = memref.load %arg1[%c1] : memref<3xf32, #tpu.memory_space<smem>>
    %c2 = arith.constant 2 : index
    %2 = memref.load %arg1[%c2] : memref<3xf32, #tpu.memory_space<smem>>
    %c0_0 = arith.constant 0 : index
    %c0_1 = arith.constant 0 : index
    %3 = vector.load %arg2[%c0_0, %c0_1] : memref<8x1024xf32, #tpu.memory_space<vmem>>, vector<8x1024xf32>
    %c0_2 = arith.constant 0 : index
    %c0_3 = arith.constant 0 : index
    %4 = vector.load %arg5[%c0_2, %c0_3] : memref<32x1xf32, #tpu.memory_space<vmem>>, vector<32x1xf32>
    %c0_4 = arith.constant 0 : index
    %c0_5 = arith.constant 0 : index
    %5 = vector.load %arg4[%c0_4, %c0_5] : memref<32x1xf32, #tpu.memory_space<vmem>>, vector<32x1xf32>
    %6 = vector.broadcast %0 : f32 to vector<32x1xf32>
    %7 = arith.mulf %6, %5 : vector<32x1xf32>
    %8 = arith.addf %4, %7 : vector<32x1xf32>
    %c0_6 = arith.constant 0 : index
    %c0_7 = arith.constant 0 : index
    %9 = vector.load %arg3[%c0_6, %c0_7] : memref<32x8xf32, #tpu.memory_space<vmem>>, vector<32x8xf32>
    %cst = arith.constant dense<0.000000e+00> : vector<32x1024xf32>
    %10 = tpu.matmul %9, %3, %cst {dimension_numbers = #tpu.dot_dimension_numbers<[1], [0], [0], [1], [0, 0, 1, 1], [], []>} : vector<32x8xf32>, vector<8x1024xf32>, vector<32x1024xf32> -> vector<32x1024xf32>
    %11 = vector.broadcast %8 : vector<32x1xf32> to vector<32x1024xf32>
    %12 = arith.addf %10, %11 : vector<32x1024xf32>
    %c0_8 = arith.constant 0 : index
    %c0_9 = arith.constant 0 : index
    %13 = vector.load %arg6[%c0_8, %c0_9] : memref<32x1xf32, #tpu.memory_space<vmem>>, vector<32x1xf32>
    %14 = vector.broadcast %13 : vector<32x1xf32> to vector<32x1024xf32>
    %15 = arith.mulf %12, %14 : vector<32x1024xf32>
    %c0_10 = arith.constant 0 : index
    %c0_11 = arith.constant 0 : index
    %16 = vector.load %arg7[%c0_10, %c0_11] : memref<32x1xf32, #tpu.memory_space<vmem>>, vector<32x1xf32>
    %17 = vector.broadcast %16 : vector<32x1xf32> to vector<32x1024xf32>
    %18 = arith.addf %15, %17 : vector<32x1024xf32>
    %cst_12 = arith.constant 0.000000e+00 : f32
    %19 = vector.broadcast %cst_12 : f32 to vector<32x1024xf32>
    %20 = arith.cmpf ogt, %18, %19 : vector<32x1024xf32>
    %21 = vector.broadcast %1 : f32 to vector<32x1024xf32>
    %22 = arith.mulf %21, %18 : vector<32x1024xf32>
    %23 = arith.select %20, %18, %22 : vector<32x1024xi1>, vector<32x1024xf32>
    %c0_13 = arith.constant 0 : index
    %c0_14 = arith.constant 0 : index
    %24 = vector.load %arg8[%c0_13, %c0_14] : memref<32x1xf32, #tpu.memory_space<vmem>>, vector<32x1xf32>
    %25 = vector.broadcast %24 : vector<32x1xf32> to vector<32x1024xf32>
    %26 = arith.mulf %23, %25 : vector<32x1024xf32>
    %cst_15 = arith.constant dense<0.000000e+00> : vector<1024xf32>
    %27 = vector.multi_reduction <add>, %26, %cst_15 [0] : vector<32x1024xf32> to vector<1024xf32>
    %28 = vector.shape_cast %27 : vector<1024xf32> to vector<1x1024xf32>
    %29 = vector.broadcast %2 : f32 to vector<1x1024xf32>
    %30 = arith.addf %28, %29 : vector<1x1024xf32>
    %c0_16 = arith.constant 0 : index
    %c0_17 = arith.constant 0 : index
    %31 = vector.load %arg9[%c0_16, %c0_17] : memref<1x1024xf32, #tpu.memory_space<vmem>>, vector<1x1024xf32>
    tpu.vector_store %arg9[%c0_16, %c0_17], %30 {strides = array<i32>} : memref<1x1024xf32, #tpu.memory_space<vmem>>, vector<1x1024xf32>,
    return
  }
  func.func @transform_0(%arg0: i32) -> i32 {
    %c0_i32 = arith.constant 0 : i32
    %c0_i32_0 = arith.constant 0 : i32
    return %c0_i32 : i32
  }
  func.func @transform_1(%arg0: i32) -> (i32, i32) {
    %c0_i32 = arith.constant 0 : i32
    %c0_i32_0 = arith.constant 0 : i32
    return %c0_i32, %arg0 : i32, i32
  }
  func.func @transform_2(%arg0: i32) -> (i32, i32) {
    %c0_i32 = arith.constant 0 : i32
    %c0_i32_0 = arith.constant 0 : i32
    %c0_i32_1 = arith.constant 0 : i32
    return %c0_i32, %c0_i32_0 : i32, i32
  }
  func.func @transform_3(%arg0: i32) -> (i32, i32) {
    %c0_i32 = arith.constant 0 : i32
    %c0_i32_0 = arith.constant 0 : i32
    %c0_i32_1 = arith.constant 0 : i32
    return %c0_i32, %c0_i32_0 : i32, i32
  }
  func.func @transform_4(%arg0: i32) -> (i32, i32) {
    %c0_i32 = arith.constant 0 : i32
    %c0_i32_0 = arith.constant 0 : i32
    %c0_i32_1 = arith.constant 0 : i32
    return %c0_i32, %c0_i32_0 : i32, i32
  }
  func.func @transform_5(%arg0: i32) -> (i32, i32) {
    %c0_i32 = arith.constant 0 : i32
    %c0_i32_0 = arith.constant 0 : i32
    %c0_i32_1 = arith.constant 0 : i32
    return %c0_i32, %c0_i32_0 : i32, i32
  }
  func.func @transform_6(%arg0: i32) -> (i32, i32) {
    %c0_i32 = arith.constant 0 : i32
    %c0_i32_0 = arith.constant 0 : i32
    %c0_i32_1 = arith.constant 0 : i32
    return %c0_i32, %c0_i32_0 : i32, i32
  }
  func.func @transform_7(%arg0: i32) -> (i32, i32) {
    %c0_i32 = arith.constant 0 : i32
    %c0_i32_0 = arith.constant 0 : i32
    %c0_i32_1 = arith.constant 0 : i32
    return %c0_i32, %c0_i32_0 : i32, i32
  }
  func.func @transform_8(%arg0: i32) -> (i32, i32) {
    %c0_i32 = arith.constant 0 : i32
    %c0_i32_0 = arith.constant 0 : i32
    return %c0_i32, %arg0 : i32, i32
  }
}

</mosaic_0001>

<llo_original>
// kernel: tpu_custom_call.1
$region0: #{tpu_custom_call.1}
  #allocation0 [shape = 'u32[]', space=smem, size = 0x4, offset = 0x4, fixed_abs, tag = 'smem constant byte address 0x4 - core index']
  #allocation1 [shape = 'u32[144,128]{1,0:T(1,128)}', space=vmem, size = 0x12000, scoped, tag = 'internal scratch']
  %s0 = inlined_call_operand.vmem [shape: f32[3], index: 0, kind: input, shape index: {}]
  %s1 = inlined_call_operand.vmem [shape: f32[8,2048], index: 1, kind: input, shape index: {}]
  %s2 = inlined_call_operand.vmem [shape: f32[32,8], index: 2, kind: input, shape index: {}]
  %s3 = inlined_call_operand.vmem [shape: f32[32,1], index: 3, kind: input, shape index: {}]
  %s4 = inlined_call_operand.vmem [shape: f32[32,1], index: 4, kind: input, shape index: {}]
  %s5 = inlined_call_operand.vmem [shape: f32[32,1], index: 5, kind: input, shape index: {}]
  %s6 = inlined_call_operand.vmem [shape: f32[32,1], index: 6, kind: input, shape index: {}]
  %s7 = inlined_call_operand.vmem [shape: f32[32,1], index: 7, kind: input, shape index: {}]
  %s8 = inlined_call_operand.hbm [shape: f32[1,2048], index: 8, kind: output, shape index: {}]
  %s9 = sld [smem:[#allocation0]]
  $region69: #{tpu_custom_call.1} parent=0
    _
  %s11 = ssub.s32 1, %s9
  %s12 = scalar_select 0, %s11, %s9
  $region1: #{tpu_custom_call.1} parent=0
    #allocation2 [shape = 'u8[512]{0}', space=smem, size = 0x200, scoped, tag = 'input window, operand 0, single buffered']
    #allocation3 [shape = 's32[2]{0}', space=sflag, size = 0x8, scoped, tag = 'scoped memory for tpu_custom_call.1']
    #allocation4 [shape = 's32[2]{0}', space=sflag, size = 0x8, scoped, tag = 'scoped memory for tpu_custom_call.1']
    #allocation5 [shape = 'u8[8192]{0}', space=vmem, size = 0x2000, scoped, tag = 'output window, operand 0']
    %13 = vsyncpa [#allocation4], 0
    %14 = vsyncpa [#allocation3], 0
    %s15 = scalar_lea.sflag [#allocation3], 1
    %16 = vsyncpa %s15, 0
    loop: start=0, step=1, limit=4
    $region2: #{tpu_custom_call.1} parent=1 // loop_pre_header
      _
    $region3: #{tpu_custom_call.1} parent=1 // loop_header
      %s18 = sphi 0, %s22
      %p19 = scmp.ge.s32.totalorder %s18, 4
      %s26 = sphi 0, %s26
      %s28 = sphi 0, %s26
      %s29 = sphi 0, %s28
      %s43 = sphi 0, %s29
      %s49 = sphi 0, %s51
      %s52 = sphi 0, %s49
      %s53 = sphi 0, %s52
      %s69 = sphi 0, %s53
      %s73 = sphi 0, %s73
      %s75 = sphi 0, %s73
      %s76 = sphi 0, %s75
      %s90 = sphi 0, %s76
      %s94 = sphi 0, %s94
      %s96 = sphi 0, %s94
      %s97 = sphi 0, %s96
      %s111 = sphi 0, %s97
      %s115 = sphi 0, %s115
      %s117 = sphi 0, %s115
      %s118 = sphi 0, %s117
      %s132 = sphi 0, %s118
      %s136 = sphi 0, %s136
      %s138 = sphi 0, %s136
      %s139 = sphi 0, %s138
      %s153 = sphi 0, %s139
      %s157 = sphi 0, %s157
      %s159 = sphi 0, %s157
      %s160 = sphi 0, %s159
      %s174 = sphi 0, %s160
      %s178 = sphi 0, %s178
      %s180 = sphi 0, %s178
      %s181 = sphi 0, %s180
      %s195 = sphi 0, %s181
      %s201 = sphi 0, %s203
      %s204 = sphi 0, %s201
      %s205 = sphi 0, %s204
      %s221 = sphi 0, %s205
    $region4: #{tpu_custom_call.1} parent=1 // loop_header_branch
      %21 = sbr.rel (%p19) target = $region8
    $region5: #{tpu_custom_call.1} parent=1 // loop_body
      %s23 = ssub.s32 %s18, 1
      %s24 = ssub.s32 %s18, 2
      %s25 = sadd.s32 %s18, 1
      %s27 = sadd.s32 %s26, 1
      %p30 = scmp.eq.s32.totalorder %s18, 1
      %p31 = scmp.ne.s32.totalorder %s26, %s28
      %p32 = scmp.eq.s32.totalorder %s18, 0
      %p33 = por %p31, %p32
      %p34 = scmp.ne.s32.totalorder %s26, %s28
      %p35 = scmp.eq.s32.totalorder %s23, 1
      %p36 = por %p34, %p35
      %p37 = scmp.ne.s32.totalorder %s28, %s29
      %p38 = scmp.eq.s32.totalorder %s23, 0
      %p39 = por %p37, %p38
      %p40 = scmp.ne.s32.totalorder %s28, %s29
      %p41 = scmp.eq.s32.totalorder %s24, 1
      %p42 = por %p40, %p41
      %p44 = scmp.ne.s32.totalorder %s29, %s43
      %p45 = scmp.eq.s32.totalorder %s24, 0
      %p46 = por %p44, %p45
      %s47 = ssub.s32 %s18, %s25
      %p48 = scmp.eq.s32.totalorder %s47, 0
      %s50 = sadd.s32 %s49, 1
      %s51 = scalar_select %p48, %s49, %s50
      %p54 = pneg %p48
      %p55 = scmp.eq.s32.totalorder %s18, 1
      %p56 = por %p54, %p55
      %p57 = scmp.ne.s32.totalorder %s49, %s52
      %p58 = scmp.eq.s32.totalorder %s18, 0
      %p59 = por %p57, %p58
      %p60 = scmp.ne.s32.totalorder %s49, %s52
      %p61 = scmp.eq.s32.totalorder %s23, 1
      %p62 = por %p60, %p61
      %p63 = scmp.ne.s32.totalorder %s52, %s53
      %p64 = scmp.eq.s32.totalorder %s23, 0
      %p65 = por %p63, %p64
      %p66 = scmp.ne.s32.totalorder %s52, %s53
      %p67 = scmp.eq.s32.totalorder %s24, 1
      %p68 = por %p66, %p67
      %p70 = scmp.ne.s32.totalorder %s53, %s69
      %p71 = scmp.eq.s32.totalorder %s24, 0
      %p72 = por %p70, %p71
      %s74 = sadd.s32 %s73, 1
      %p77 = scmp.eq.s32.totalorder %s18, 1
      %p78 = scmp.ne.s32.totalorder %s73, %s75
      %p79 = scmp.eq.s32.totalorder %s18, 0
      %p80 = por %p78, %p79
      %p81 = scmp.ne.s32.totalorder %s73, %s75
      %p82 = scmp.eq.s32.totalorder %s23, 1
      %p83 = por %p81, %p82
      %p84 = scmp.ne.s32.totalorder %s75, %s76
      %p85 = scmp.eq.s32.totalorder %s23, 0
      %p86 = por %p84, %p85
      %p87 = scmp.ne.s32.totalorder %s75, %s76
      %p88 = scmp.eq.s32.totalorder %s24, 1
      %p89 = por %p87, %p88
      %p91 = scmp.ne.s32.totalorder %s76, %s90
      %p92 = scmp.eq.s32.totalorder %s24, 0
      %p93 = por %p91, %p92
      %s95 = sadd.s32 %s94, 1
      %p98 = scmp.eq.s32.totalorder %s18, 1
      %p99 = scmp.ne.s32.totalorder %s94, %s96
      %p100 = scmp.eq.s32.totalorder %s18, 0
      %p101 = por %p99, %p100
      %p102 = scmp.ne.s32.totalorder %s94, %s96
      %p103 = scmp.eq.s32.totalorder %s23, 1
      %p104 = por %p102, %p103
      %p105 = scmp.ne.s32.totalorder %s96, %s97
      %p106 = scmp.eq.s32.totalorder %s23, 0
      %p107 = por %p105, %p106
      %p108 = scmp.ne.s32.totalorder %s96, %s97
      %p109 = scmp.eq.s32.totalorder %s24, 1
      %p110 = por %p108, %p109
      %p112 = scmp.ne.s32.totalorder %s97, %s111
      %p113 = scmp.eq.s32.totalorder %s24, 0
      %p114 = por %p112, %p113
      %s116 = sadd.s32 %s115, 1
      %p119 = scmp.eq.s32.totalorder %s18, 1
      %p120 = scmp.ne.s32.totalorder %s115, %s117
      %p121 = scmp.eq.s32.totalorder %s18, 0
      %p122 = por %p120, %p121
      %p123 = scmp.ne.s32.totalorder %s115, %s117
      %p124 = scmp.eq.s32.totalorder %s23, 1
      %p125 = por %p123, %p124
      %p126 = scmp.ne.s32.totalorder %s117, %s118
      %p127 = scmp.eq.s32.totalorder %s23, 0
      %p128 = por %p126, %p127
      %p129 = scmp.ne.s32.totalorder %s117, %s118
      %p130 = scmp.eq.s32.totalorder %s24, 1
      %p131 = por %p129, %p130
      %p133 = scmp.ne.s32.totalorder %s118, %s132
      %p134 = scmp.eq.s32.totalorder %s24, 0
      %p135 = por %p133, %p134
      %s137 = sadd.s32 %s136, 1
      %p140 = scmp.eq.s32.totalorder %s18, 1
      %p141 = scmp.ne.s32.totalorder %s136, %s138
      %p142 = scmp.eq.s32.totalorder %s18, 0
      %p143 = por %p141, %p142
      %p144 = scmp.ne.s32.totalorder %s136, %s138
      %p145 = scmp.eq.s32.totalorder %s23, 1
      %p146 = por %p144, %p145
      %p147 = scmp.ne.s32.totalorder %s138, %s139
      %p148 = scmp.eq.s32.totalorder %s23, 0
      %p149 = por %p147, %p148
      %p150 = scmp.ne.s32.totalorder %s138, %s139
      %p151 = scmp.eq.s32.totalorder %s24, 1
      %p152 = por %p150, %p151
      %p154 = scmp.ne.s32.totalorder %s139, %s153
      %p155 = scmp.eq.s32.totalorder %s24, 0
      %p156 = por %p154, %p155
      %s158 = sadd.s32 %s157, 1
      %p161 = scmp.eq.s32.totalorder %s18, 1
      %p162 = scmp.ne.s32.totalorder %s157, %s159
      %p163 = scmp.eq.s32.totalorder %s18, 0
      %p164 = por %p162, %p163
      %p165 = scmp.ne.s32.totalorder %s157, %s159
      %p166 = scmp.eq.s32.totalorder %s23, 1
      %p167 = por %p165, %p166
      %p168 = scmp.ne.s32.totalorder %s159, %s160
      %p169 = scmp.eq.s32.totalorder %s23, 0
      %p170 = por %p168, %p169
      %p171 = scmp.ne.s32.totalorder %s159, %s160
      %p172 = scmp.eq.s32.totalorder %s24, 1
      %p173 = por %p171, %p172
      %p175 = scmp.ne.s32.totalorder %s160, %s174
      %p176 = scmp.eq.s32.totalorder %s24, 0
      %p177 = por %p175, %p176
      %s179 = sadd.s32 %s178, 1
      %p182 = scmp.eq.s32.totalorder %s18, 1
      %p183 = scmp.ne.s32.totalorder %s178, %s180
      %p184 = scmp.eq.s32.totalorder %s18, 0
      %p185 = por %p183, %p184
      %p186 = scmp.ne.s32.totalorder %s178, %s180
      %p187 = scmp.eq.s32.totalorder %s23, 1
      %p188 = por %p186, %p187
      %p189 = scmp.ne.s32.totalorder %s180, %s181
      %p190 = scmp.eq.s32.totalorder %s23, 0
      %p191 = por %p189, %p190
      %p192 = scmp.ne.s32.totalorder %s180, %s181
      %p193 = scmp.eq.s32.totalorder %s24, 1
      %p194 = por %p192, %p193
      %p196 = scmp.ne.s32.totalorder %s181, %s195
      %p197 = scmp.eq.s32.totalorder %s24, 0
      %p198 = por %p196, %p197
      %s199 = ssub.s32 %s18, %s25
      %p200 = scmp.eq.s32.totalorder %s199, 0
      %s202 = sadd.s32 %s201, 1
      %s203 = scalar_select %p200, %s201, %s202
      %p206 = pneg %p200
      %p207 = scmp.eq.s32.totalorder %s18, 1
      %p208 = por %p206, %p207
      %p209 = scmp.ne.s32.totalorder %s201, %s204
      %p210 = scmp.eq.s32.totalorder %s18, 0
      %p211 = por %p209, %p210
      %p212 = scmp.ne.s32.totalorder %s201, %s204
      %p213 = scmp.eq.s32.totalorder %s23, 1
      %p214 = por %p212, %p213
      %p215 = scmp.ne.s32.totalorder %s204, %s205
      %p216 = scmp.eq.s32.totalorder %s23, 0
      %p217 = por %p215, %p216
      %p218 = scmp.ne.s32.totalorder %s204, %s205
      %p219 = scmp.eq.s32.totalorder %s24, 1
      %p220 = por %p218, %p219
      %p222 = scmp.ne.s32.totalorder %s205, %s221
      %p223 = scmp.eq.s32.totalorder %s24, 0
      %p224 = por %p222, %p223
      %p225 = scmp.le.s32.totalorder 1, %s18
      %p226 = scmp.lt.s32.totalorder %s18, 3
      %p227 = pnand %p225, %p226
      %p228 = pneg %p227
      // Predicated region
      $region9: #{tpu_custom_call.1} parent=5 // pred_check
        _
      $region10: #{tpu_custom_call.1} parent=5 // pred_check_branch
        %230 = sbr.rel (%p227) target = $region12
      $region11: #{tpu_custom_call.1} parent=5 // pred_region
        %s231 = ssub.s32 %s18, 1
        // Predicated region
        $region13: #{tpu_custom_call.1} parent=11 // pred_check
          %p232 = pneg %p39
        $region14: #{tpu_custom_call.1} parent=11 // pred_check_branch
          %234 = sbr.rel (%p232) target = $region16
        $region15: #{tpu_custom_call.1} parent=11 // pred_region
          %s236 = ssub.s32 16, 16
          %237 = vsyncadd [#allocation4], %s236
          %s239 = sshll.u32 %s0, 4
          %s240 = int_to_ptr.vmem [resolvable:$true] %s239
          %242 = dma.vmem_to_smem %s240, 16, [#allocation2], [#allocation4]
        $region16: #{tpu_custom_call.1} parent=11 // pred_fallthru
          _
        // Predicated region
        $region17: #{tpu_custom_call.1} parent=11 // pred_check
          %p243 = pneg %p86
        $region18: #{tpu_custom_call.1} parent=11 // pred_check_branch
          %245 = sbr.rel (%p243) target = $region20
        $region19: #{tpu_custom_call.1} parent=11 // pred_region
          _
        $region20: #{tpu_custom_call.1} parent=11 // pred_fallthru
          _
        // Predicated region
        $region21: #{tpu_custom_call.1} parent=11 // pred_check
          %p246 = pneg %p107
        $region22: #{tpu_custom_call.1} parent=11 // pred_check_branch
          %248 = sbr.rel (%p246) target = $region24
        $region23: #{tpu_custom_call.1} parent=11 // pred_region
          _
        $region24: #{tpu_custom_call.1} parent=11 // pred_fallthru
          _
        // Predicated region
        $region25: #{tpu_custom_call.1} parent=11 // pred_check
          %p249 = pneg %p128
        $region26: #{tpu_custom_call.1} parent=11 // pred_check_branch
          %251 = sbr.rel (%p249) target = $region28
        $region27: #{tpu_custom_call.1} parent=11 // pred_region
          _
        $region28: #{tpu_custom_call.1} parent=11 // pred_fallthru
          _
        // Predicated region
        $region29: #{tpu_custom_call.1} parent=11 // pred_check
          %p252 = pneg %p149
        $region30: #{tpu_custom_call.1} parent=11 // pred_check_branch
          %254 = sbr.rel (%p252) target = $region32
        $region31: #{tpu_custom_call.1} parent=11 // pred_region
          _
        $region32: #{tpu_custom_call.1} parent=11 // pred_fallthru
          _
        // Predicated region
        $region33: #{tpu_custom_call.1} parent=11 // pred_check
          %p255 = pneg %p170
        $region34: #{tpu_custom_call.1} parent=11 // pred_check_branch
          %257 = sbr.rel (%p255) target = $region36
        $region35: #{tpu_custom_call.1} parent=11 // pred_region
          _
        $region36: #{tpu_custom_call.1} parent=11 // pred_fallthru
          _
        // Predicated region
        $region37: #{tpu_custom_call.1} parent=11 // pred_check
          %p258 = pneg %p191
        $region38: #{tpu_custom_call.1} parent=11 // pred_check_branch
          %260 = sbr.rel (%p258) target = $region40
        $region39: #{tpu_custom_call.1} parent=11 // pred_region
          _
        $region40: #{tpu_custom_call.1} parent=11 // pred_fallthru
          _
      $region12: #{tpu_custom_call.1} parent=5 // pred_fallthru
        _
      %p261 = scmp.lt.s32.totalorder %s18, 2
      // Predicated region
      $region41: #{tpu_custom_call.1} parent=5 // pred_check
        %p262 = pneg %p261
      $region42: #{tpu_custom_call.1} parent=5 // pred_check_branch
        %264 = sbr.rel (%p262) target = $region44
      $region43: #{tpu_custom_call.1} parent=5 // pred_region
        // Predicated region
        $region45: #{tpu_custom_call.1} parent=43 // pred_check
          %p265 = pneg %p59
        $region46: #{tpu_custom_call.1} parent=43 // pred_check_branch
          %267 = sbr.rel (%p265) target = $region48
        $region47: #{tpu_custom_call.1} parent=43 // pred_region
          %s268 = smul.u32 8, %s18
          %p269 = scmp.lt.s32.totalorder %s268, 15
          %s270 = scalar_select %p269, %s268, 15
          %s271 = smul.addr %s270, 8
          %s272 = scalar_lea.vmem %s1, %s271
          %s273 = smul.u32 8, %s18
        $region48: #{tpu_custom_call.1} parent=43 // pred_fallthru
          _
      $region44: #{tpu_custom_call.1} parent=5 // pred_fallthru
        _
      %p274 = scmp.le.s32.totalorder 1, %s18
      %p275 = scmp.lt.s32.totalorder %s18, 3
      %p276 = pnand %p274, %p275
      %p277 = pneg %p276
      // Predicated region
      $region49: #{tpu_custom_call.1} parent=5 // pred_check
        _
      $region50: #{tpu_custom_call.1} parent=5 // pred_check_branch
        %279 = sbr.rel (%p276) target = $region52
      $region51: #{tpu_custom_call.1} parent=5 // pred_region
        %s280 = ssub.s32 %s18, 1
        // Predicated region
        $region53: #{tpu_custom_call.1} parent=51 // pred_check
          %p281 = pneg %p39
        $region54: #{tpu_custom_call.1} parent=51 // pred_check_branch
          %283 = sbr.rel (%p281) target = $region56
        $region55: #{tpu_custom_call.1} parent=51 // pred_region
          %284 = dma.done [#allocation4], 16
        $region56: #{tpu_custom_call.1} parent=51 // pred_fallthru
          _
        %285 = sfence
        %p286 = pneg %p39
        %p287 = pneg %p36
        %s288 = smul.u32 8, %s23
        %p289 = scmp.lt.s32.totalorder %s288, 15
        %s290 = scalar_select %p289, %s288, 15
        %s291 = smul.addr %s290, 8
        %s292 = scalar_lea.vmem %s1, %s291
        %p293 = pneg %p65
        %p294 = pneg %p62
        %p295 = pneg %p86
        %p296 = pneg %p83
        %p297 = pneg %p107
        %p298 = pneg %p104
        %p299 = pneg %p128
        %p300 = pneg %p125
        %p301 = pneg %p149
        %p302 = pneg %p146
        %p303 = pneg %p170
        %p304 = pneg %p167
        %p305 = pneg %p191
        %p306 = pneg %p188
        %p307 = pneg %p217
        %p308 = pneg %p214
        %s309 = sand.u32 %s204, 1
        %s310 = scalar_lea.sflag [#allocation3], %s309
        %s311 = sand.u32 %s204, 1
        %s312 = smul.addr %s311, 8
        %s313 = scalar_lea.vmem [#allocation5], %s312
        %s314 = smul.u32 8, %s23
        %p315 = scmp.lt.s32.totalorder %s314, 15
        %s316 = scalar_select %p315, %s314, 15
        %s317 = smul.addr %s316, 8
        %s318 = scalar_lea.vmem %s1, %s317
        %s319 = smul.u32 8, %s23
        %s320 = smul.u32 8, %s23
        %s321 = sld [smem:[#allocation2]]
        %s322 = sld [smem:[#allocation2 + $0x1]]
        %s323 = sld [smem:[#allocation2 + $0x2]]
        %v324 = vld [vmem:[%s318] sm:$0xff]
        %v325 = vld [vmem:[%s318 + $0x8] sm:$0xff]
        %v326 = vld [vmem:[%s318 + $0x10] sm:$0xff]
        %v327 = vld [vmem:[%s318 + $0x18] sm:$0xff]
        %v328 = vld [vmem:[%s318 + $0x20] sm:$0xff]
        %v329 = vld [vmem:[%s318 + $0x28] sm:$0xff]
        %v330 = vld [vmem:[%s318 + $0x30] sm:$0xff]
        %v331 = vld [vmem:[%s318 + $0x38] sm:$0xff]
        %v332 = vld [vmem:[%s4] sm:$0xff]
        %v333 = vld [vmem:[%s4 + $0x8] sm:$0xff]
        %v334 = vld [vmem:[%s4 + $0x10] sm:$0xff]
        %v335 = vld [vmem:[%s4 + $0x18] sm:$0xff]
        %v336 = vld [vmem:[%s3] sm:$0xff]
        %v337 = vld [vmem:[%s3 + $0x8] sm:$0xff]
        %v338 = vld [vmem:[%s3 + $0x10] sm:$0xff]
        %v339 = vld [vmem:[%s3 + $0x18] sm:$0xff]
        %v340 = vstv %s321
        %v341 = vmul.f32 %v340, %v336
        %v342 = vmul.f32 %v340, %v337
        %v343 = vmul.f32 %v340, %v338
        %v344 = vmul.f32 %v340, %v339
        %v345 = vadd.f32 %v332, %v341
        %v346 = vadd.f32 %v333, %v342
        %v347 = vadd.f32 %v334, %v343
        %v348 = vadd.f32 %v335, %v344
        %v349 = vld [vmem:[%s2] sm:$0xff]
        %v350 = vld [vmem:[%s2 + $0x8] sm:$0xff]
        %v351 = vld [vmem:[%s2 + $0x10] sm:$0xff]
        %v352 = vld [vmem:[%s2 + $0x18] sm:$0xff]
        %354 = vset.pattern.permute.xlu0 0
        %355 = vperm.xlu0 %354, %v345
        %v356 = vpop.permute.xlu0 %355
        %359 = vset.pattern.permute.xlu0 0
        %360 = vperm.xlu0 %359, %v346
        %v361 = vpop.permute.xlu0 %360
        %364 = vset.pattern.permute.xlu0 0
        %365 = vperm.xlu0 %364, %v347
        %v366 = vpop.permute.xlu0 %365
        %369 = vset.pattern.permute.xlu0 0
        %370 = vperm.xlu0 %369, %v348
        %v371 = vpop.permute.xlu0 %370
        %vm373 = vcmask 64512
        %v375 = vsel %vm373, %v349, 0
        %v378 = vsel %vm373, %v350, 0
        %v381 = vsel %vm373, %v351, 0
        %v384 = vsel %vm373, %v352, 0
        %386 = vmatprep.subr.mxu0 %v325
        %387 = vmatpush1.msra.mxu0 %v324
        %388 = vmatprep.subr.mxu0 0.0
        %389 = vmatpush1.msra.mxu0 0.0
        %390 = vmatprep.subr.mxu0 0.0
        %391 = vmatpush1.msra.mxu0 0.0
        %392 = vmatprep.subr.mxu0 0.0
        %393 = vmatpush1.msra.mxu0 0.0
        %394 = vmatprep.subr.mxu0 0.0
        %395 = vmatpush1.msra.mxu0 0.0
        %396 = vmatprep.subr.mxu0 0.0
        %397 = vmatpush1.msra.mxu0 0.0
        %398 = vmatprep.subr.mxu0 0.0
        %399 = vmatpush1.msra.mxu0 0.0
        %400 = vmatprep.subr.mxu0 0.0
        %401 = vmatpush1.msra.mxu0 0.0
        %402 = vmatprep.subr.mxu0 0.0
        %403 = vmatpush1.msra.mxu0 0.0
        %404 = vmatprep.subr.mxu0 0.0
        %405 = vmatpush1.msra.mxu0 0.0
        %406 = vmatprep.subr.mxu0 0.0
        %407 = vmatpush1.msra.mxu0 0.0
        %408 = vmatprep.subr.mxu0 0.0
        %409 = vmatpush1.msra.mxu0 0.0
        %410 = vmatprep.subr.mxu0 0.0
        %411 = vmatpush1.msra.mxu0 0.0
        %412 = vmatprep.subr.mxu0 0.0
        %413 = vmatpush1.msra.mxu0 0.0
        %414 = vmatprep.subr.mxu0 0.0
        %415 = vmatpush1.msra.mxu0 0.0
        %416 = vmatprep.subr.mxu0 0.0
        %417 = vmatpush1.msra.mxu0 0.0
        %418 = vmatprep.subr.mxu0 0.0
        %419 = vmatpush1.msra.mxu0 0.0
        %420 = vmatprep.subr.mxu0 0.0
        %421 = vmatpush1.msra.mxu0 0.0
        %422 = vmatprep.subr.mxu0 0.0
        %423 = vmatpush1.msra.mxu0 0.0
        %424 = vmatprep.subr.mxu0 0.0
        %425 = vmatpush1.msra.mxu0 0.0
        %426 = vmatprep.subr.mxu0 0.0
        %427 = vmatpush1.msra.mxu0 0.0
        %428 = vmatprep.subr.mxu0 0.0
        %429 = vmatpush1.msra.mxu0 0.0
        %430 = vmatprep.subr.mxu0 0.0
        %431 = vmatpush1.msra.mxu0 0.0
        %432 = vmatprep.subr.mxu0 0.0
        %433 = vmatpush1.msra.mxu0 0.0
        %434 = vmatprep.subr.mxu0 0.0
        %435 = vmatpush1.msra.mxu0 0.0
        %436 = vmatprep.subr.mxu0 0.0
        %437 = vmatpush1.msra.mxu0 0.0
        %438 = vmatprep.subr.mxu0 0.0
        %439 = vmatpush1.msra.mxu0 0.0
        %440 = vmatprep.subr.mxu0 0.0
        %441 = vmatpush1.msra.mxu0 0.0
        %442 = vmatprep.subr.mxu0 0.0
        %443 = vmatpush1.msra.mxu0 0.0
        %444 = vmatprep.subr.mxu0 0.0
        %445 = vmatpush1.msra.mxu0 0.0
        %446 = vmatprep.subr.mxu0 0.0
        %447 = vmatpush1.msra.mxu0 0.0
        %448 = vmatprep.subr.mxu0 0.0
        %449 = vmatpush1.msra.mxu0 0.0
        %450 = vmatprep.mubr.f32.mxu0 0.0
        %451 = vmatmul.mubr.f32.gmra.mrb[0].mxu0 %v375
        %v452 = vpop.f32.mrb[0].mxu0
        %v453 = vadd.f32 %v356, %v452
        %v454 = vpop.f32.mrb[0].mxu0
        %v455 = vadd.f32 %v356, %v454
        %456 = vmatprep.mubr.f32.mxu0 0.0
        %457 = vmatmul.mubr.f32.gmra.mrb[0].mxu0 %v378
        %v458 = vpop.f32.mrb[0].mxu0
        %v459 = vadd.f32 %v361, %v458
        %v460 = vpop.f32.mrb[0].mxu0
        %v461 = vadd.f32 %v361, %v460
        %462 = vmatprep.mubr.f32.mxu0 0.0
        %463 = vmatmul.mubr.f32.gmra.mrb[0].mxu0 %v381
        %v464 = vpop.f32.mrb[0].mxu0
        %v465 = vadd.f32 %v366, %v464
        %v466 = vpop.f32.mrb[0].mxu0
        %v467 = vadd.f32 %v366, %v466
        %468 = vmatprep.mubr.f32.mxu0 0.0
        %469 = vmatmul.mubr.f32.gmra.mrb[0].mxu0 %v384
        %v470 = vpop.f32.mrb[0].mxu0
        %v471 = vadd.f32 %v371, %v470
        %v472 = vpop.f32.mrb[0].mxu0
        %v473 = vadd.f32 %v371, %v472
        %474 = vdwg.mxu0
        %475 = vmatprep.subr.mxu0 %v327
        %476 = vmatpush1.msra.mxu0 %v326
        %477 = vmatprep.subr.mxu0 0.0
        %478 = vmatpush1.msra.mxu0 0.0
        %479 = vmatprep.subr.mxu0 0.0
        %480 = vmatpush1.msra.mxu0 0.0
        %481 = vmatprep.subr.mxu0 0.0
        %482 = vmatpush1.msra.mxu0 0.0
        %483 = vmatprep.subr.mxu0 0.0
        %484 = vmatpush1.msra.mxu0 0.0
        %485 = vmatprep.subr.mxu0 0.0
        %486 = vmatpush1.msra.mxu0 0.0
        %487 = vmatprep.subr.mxu0 0.0
        %488 = vmatpush1.msra.mxu0 0.0
        %489 = vmatprep.subr.mxu0 0.0
        %490 = vmatpush1.msra.mxu0 0.0
        %491 = vmatprep.subr.mxu0 0.0
        %492 = vmatpush1.msra.mxu0 0.0
        %493 = vmatprep.subr.mxu0 0.0
        %494 = vmatpush1.msra.mxu0 0.0
        %495 = vmatprep.subr.mxu0 0.0
        %496 = vmatpush1.msra.mxu0 0.0
        %497 = vmatprep.subr.mxu0 0.0
        %498 = vmatpush1.msra.mxu0 0.0
        %499 = vmatprep.subr.mxu0 0.0
        %500 = vmatpush1.msra.mxu0 0.0
        %501 = vmatprep.subr.mxu0 0.0
        %502 = vmatpush1.msra.mxu0 0.0
        %503 = vmatprep.subr.mxu0 0.0
        %504 = vmatpush1.msra.mxu0 0.0
        %505 = vmatprep.subr.mxu0 0.0
        %506 = vmatpush1.msra.mxu0 0.0
        %507 = vmatprep.subr.mxu0 0.0
        %508 = vmatpush1.msra.mxu0 0.0
        %509 = vmatprep.subr.mxu0 0.0
        %510 = vmatpush1.msra.mxu0 0.0
        %511 = vmatprep.subr.mxu0 0.0
        %512 = vmatpush1.msra.mxu0 0.0
        %513 = vmatprep.subr.mxu0 0.0
        %514 = vmatpush1.msra.mxu0 0.0
        %515 = vmatprep.subr.mxu0 0.0
        %516 = vmatpush1.msra.mxu0 0.0
        %517 = vmatprep.subr.mxu0 0.0
        %518 = vmatpush1.msra.mxu0 0.0
        %519 = vmatprep.subr.mxu0 0.0
        %520 = vmatpush1.msra.mxu0 0.0
        %521 = vmatprep.subr.mxu0 0.0
        %522 = vmatpush1.msra.mxu0 0.0
        %523 = vmatprep.subr.mxu0 0.0
        %524 = vmatpush1.msra.mxu0 0.0
        %525 = vmatprep.subr.mxu0 0.0
        %526 = vmatpush1.msra.mxu0 0.0
        %527 = vmatprep.subr.mxu0 0.0
        %528 = vmatpush1.msra.mxu0 0.0
        %529 = vmatprep.subr.mxu0 0.0
        %530 = vmatpush1.msra.mxu0 0.0
        %531 = vmatprep.subr.mxu0 0.0
        %532 = vmatpush1.msra.mxu0 0.0
        %533 = vmatprep.subr.mxu0 0.0
        %534 = vmatpush1.msra.mxu0 0.0
        %535 = vmatprep.subr.mxu0 0.0
        %536 = vmatpush1.msra.mxu0 0.0
        %537 = vmatprep.subr.mxu0 0.0
        %538 = vmatpush1.msra.mxu0 0.0
        %539 = vmatprep.mubr.f32.mxu0 0.0
        %540 = vmatmul.mubr.f32.gmra.mrb[0].mxu0 %v375
        %v541 = vpop.f32.mrb[0].mxu0
        %v542 = vadd.f32 %v356, %v541
        %v543 = vpop.f32.mrb[0].mxu0
        %v544 = vadd.f32 %v356, %v543
        %545 = vmatprep.mubr.f32.mxu0 0.0
        %546 = vmatmul.mubr.f32.gmra.mrb[0].mxu0 %v378
        %v547 = vpop.f32.mrb[0].mxu0
        %v548 = vadd.f32 %v361, %v547
        %v549 = vpop.f32.mrb[0].mxu0
        %v550 = vadd.f32 %v361, %v549
        %551 = vmatprep.mubr.f32.mxu0 0.0
        %552 = vmatmul.mubr.f32.gmra.mrb[0].mxu0 %v381
        %v553 = vpop.f32.mrb[0].mxu0
        %v554 = vadd.f32 %v366, %v553
        %v555 = vpop.f32.mrb[0].mxu0
        %v556 = vadd.f32 %v366, %v555
        %557 = vmatprep.mubr.f32.mxu0 0.0
        %558 = vmatmul.mubr.f32.gmra.mrb[0].mxu0 %v384
        %v559 = vpop.f32.mrb[0].mxu0
        %v560 = vadd.f32 %v371, %v559
        %v561 = vpop.f32.mrb[0].mxu0
        %v562 = vadd.f32 %v371, %v561
        %563 = vdwg.mxu0
        %564 = vmatprep.subr.mxu0 %v329
        %565 = vmatpush1.msra.mxu0 %v328
        %566 = vmatprep.subr.mxu0 0.0
        %567 = vmatpush1.msra.mxu0 0.0
        %568 = vmatprep.subr.mxu0 0.0
        %569 = vmatpush1.msra.mxu0 0.0
        %570 = vmatprep.subr.mxu0 0.0
        %571 = vmatpush1.msra.mxu0 0.0
        %572 = vmatprep.subr.mxu0 0.0
        %573 = vmatpush1.msra.mxu0 0.0
        %574 = vmatprep.subr.mxu0 0.0
        %575 = vmatpush1.msra.mxu0 0.0
        %576 = vmatprep.subr.mxu0 0.0
        %577 = vmatpush1.msra.mxu0 0.0
        %578 = vmatprep.subr.mxu0 0.0
        %579 = vmatpush1.msra.mxu0 0.0
        %580 = vmatprep.subr.mxu0 0.0
        %581 = vmatpush1.msra.mxu0 0.0
        %582 = vmatprep.subr.mxu0 0.0
        %583 = vmatpush1.msra.mxu0 0.0
        %584 = vmatprep.subr.mxu0 0.0
        %585 = vmatpush1.msra.mxu0 0.0
        %586 = vmatprep.subr.mxu0 0.0
        %587 = vmatpush1.msra.mxu0 0.0
        %588 = vmatprep.subr.mxu0 0.0
        %589 = vmatpush1.msra.mxu0 0.0
        %590 = vmatprep.subr.mxu0 0.0
        %591 = vmatpush1.msra.mxu0 0.0
        %592 = vmatprep.subr.mxu0 0.0
        %593 = vmatpush1.msra.mxu0 0.0
        %594 = vmatprep.subr.mxu0 0.0
        %595 = vmatpush1.msra.mxu0 0.0
        %596 = vmatprep.subr.mxu0 0.0
        %597 = vmatpush1.msra.mxu0 0.0
        %598 = vmatprep.subr.mxu0 0.0
        %599 = vmatpush1.msra.mxu0 0.0
        %600 = vmatprep.subr.mxu0 0.0
        %601 = vmatpush1.msra.mxu0 0.0
        %602 = vmatprep.subr.mxu0 0.0
        %603 = vmatpush1.msra.mxu0 0.0
        %604 = vmatprep.subr.mxu0 0.0
        %605 = vmatpush1.msra.mxu0 0.0
        %606 = vmatprep.subr.mxu0 0.0
        %607 = vmatpush1.msra.mxu0 0.0
        %608 = vmatprep.subr.mxu0 0.0
        %609 = vmatpush1.msra.mxu0 0.0
        %610 = vmatprep.subr.mxu0 0.0
        %611 = vmatpush1.msra.mxu0 0.0
        %612 = vmatprep.subr.mxu0 0.0
        %613 = vmatpush1.msra.mxu0 0.0
        %614 = vmatprep.subr.mxu0 0.0
        %615 = vmatpush1.msra.mxu0 0.0
        %616 = vmatprep.subr.mxu0 0.0
        %617 = vmatpush1.msra.mxu0 0.0
        %618 = vmatprep.subr.mxu0 0.0
        %619 = vmatpush1.msra.mxu0 0.0
        %620 = vmatprep.subr.mxu0 0.0
        %621 = vmatpush1.msra.mxu0 0.0
        %622 = vmatprep.subr.mxu0 0.0
        %623 = vmatpush1.msra.mxu0 0.0
        %624 = vmatprep.subr.mxu0 0.0
        %625 = vmatpush1.msra.mxu0 0.0
        %626 = vmatprep.subr.mxu0 0.0
        %627 = vmatpush1.msra.mxu0 0.0
        %628 = vmatprep.mubr.f32.mxu0 0.0
        %629 = vmatmul.mubr.f32.gmra.mrb[0].mxu0 %v375
        %v630 = vpop.f32.mrb[0].mxu0
        %v631 = vadd.f32 %v356, %v630
        %v632 = vpop.f32.mrb[0].mxu0
        %v633 = vadd.f32 %v356, %v632
        %634 = vmatprep.mubr.f32.mxu0 0.0
        %635 = vmatmul.mubr.f32.gmra.mrb[0].mxu0 %v378
        %v636 = vpop.f32.mrb[0].mxu0
        %v637 = vadd.f32 %v361, %v636
        %v638 = vpop.f32.mrb[0].mxu0
        %v639 = vadd.f32 %v361, %v638
        %640 = vmatprep.mubr.f32.mxu0 0.0
        %641 = vmatmul.mubr.f32.gmra.mrb[0].mxu0 %v381
        %v642 = vpop.f32.mrb[0].mxu0
        %v643 = vadd.f32 %v366, %v642
        %v644 = vpop.f32.mrb[0].mxu0
        %v645 = vadd.f32 %v366, %v644
        %646 = vmatprep.mubr.f32.mxu0 0.0
        %647 = vmatmul.mubr.f32.gmra.mrb[0].mxu0 %v384
        %v648 = vpop.f32.mrb[0].mxu0
        %v649 = vadd.f32 %v371, %v648
        %v650 = vpop.f32.mrb[0].mxu0
        %v651 = vadd.f32 %v371, %v650
        %652 = vdwg.mxu0
        %653 = vmatprep.subr.mxu0 %v331
        %654 = vmatpush1.msra.mxu0 %v330
        %655 = vmatprep.subr.mxu0 0.0
        %656 = vmatpush1.msra.mxu0 0.0
        %657 = vmatprep.subr.mxu0 0.0
        %658 = vmatpush1.msra.mxu0 0.0
        %659 = vmatprep.subr.mxu0 0.0
        %660 = vmatpush1.msra.mxu0 0.0
        %661 = vmatprep.subr.mxu0 0.0
        %662 = vmatpush1.msra.mxu0 0.0
        %663 = vmatprep.subr.mxu0 0.0
        %664 = vmatpush1.msra.mxu0 0.0
        %665 = vmatprep.subr.mxu0 0.0
        %666 = vmatpush1.msra.mxu0 0.0
        %667 = vmatprep.subr.mxu0 0.0
        %668 = vmatpush1.msra.mxu0 0.0
        %669 = vmatprep.subr.mxu0 0.0
        %670 = vmatpush1.msra.mxu0 0.0
        %671 = vmatprep.subr.mxu0 0.0
        %672 = vmatpush1.msra.mxu0 0.0
        %673 = vmatprep.subr.mxu0 0.0
        %674 = vmatpush1.msra.mxu0 0.0
        %675 = vmatprep.subr.mxu0 0.0
        %676 = vmatpush1.msra.mxu0 0.0
        %677 = vmatprep.subr.mxu0 0.0
        %678 = vmatpush1.msra.mxu0 0.0
        %679 = vmatprep.subr.mxu0 0.0
        %680 = vmatpush1.msra.mxu0 0.0
        %681 = vmatprep.subr.mxu0 0.0
        %682 = vmatpush1.msra.mxu0 0.0
        %683 = vmatprep.subr.mxu0 0.0
        %684 = vmatpush1.msra.mxu0 0.0
        %685 = vmatprep.subr.mxu0 0.0
        %686 = vmatpush1.msra.mxu0 0.0
        %687 = vmatprep.subr.mxu0 0.0
        %688 = vmatpush1.msra.mxu0 0.0
        %689 = vmatprep.subr.mxu0 0.0
        %690 = vmatpush1.msra.mxu0 0.0
        %691 = vmatprep.subr.mxu0 0.0
        %692 = vmatpush1.msra.mxu0 0.0
        %693 = vmatprep.subr.mxu0 0.0
        %694 = vmatpush1.msra.mxu0 0.0
        %695 = vmatprep.subr.mxu0 0.0
        %696 = vmatpush1.msra.mxu0 0.0
        %697 = vmatprep.subr.mxu0 0.0
        %698 = vmatpush1.msra.mxu0 0.0
        %699 = vmatprep.subr.mxu0 0.0
        %700 = vmatpush1.msra.mxu0 0.0
        %701 = vmatprep.subr.mxu0 0.0
        %702 = vmatpush1.msra.mxu0 0.0
        %703 = vmatprep.subr.mxu0 0.0
        %704 = vmatpush1.msra.mxu0 0.0
        %705 = vmatprep.subr.mxu0 0.0
        %706 = vmatpush1.msra.mxu0 0.0
        %707 = vmatprep.subr.mxu0 0.0
        %708 = vmatpush1.msra.mxu0 0.0
        %709 = vmatprep.subr.mxu0 0.0
        %710 = vmatpush1.msra.mxu0 0.0
        %711 = vmatprep.subr.mxu0 0.0
        %712 = vmatpush1.msra.mxu0 0.0
        %713 = vmatprep.subr.mxu0 0.0
        %714 = vmatpush1.msra.mxu0 0.0
        %715 = vmatprep.subr.mxu0 0.0
        %716 = vmatpush1.msra.mxu0 0.0
        %717 = vmatprep.mubr.f32.mxu0 0.0
        %718 = vmatmul.mubr.f32.gmra.mrb[0].mxu0 %v375
        %v719 = vpop.f32.mrb[0].mxu0
        %v720 = vadd.f32 %v356, %v719
        %v721 = vpop.f32.mrb[0].mxu0
        %v722 = vadd.f32 %v356, %v721
        %723 = vmatprep.mubr.f32.mxu0 0.0
        %724 = vmatmul.mubr.f32.gmra.mrb[0].mxu0 %v378
        %v725 = vpop.f32.mrb[0].mxu0
        %v726 = vadd.f32 %v361, %v725
        %v727 = vpop.f32.mrb[0].mxu0
        %v728 = vadd.f32 %v361, %v727
        %729 = vmatprep.mubr.f32.mxu0 0.0
        %730 = vmatmul.mubr.f32.gmra.mrb[0].mxu0 %v381
        %v731 = vpop.f32.mrb[0].mxu0
        %v732 = vadd.f32 %v366, %v731
        %v733 = vpop.f32.mrb[0].mxu0
        %v734 = vadd.f32 %v366, %v733
        %735 = vmatprep.mubr.f32.mxu0 0.0
        %736 = vmatmul.mubr.f32.gmra.mrb[0].mxu0 %v384
        %v737 = vpop.f32.mrb[0].mxu0
        %v738 = vadd.f32 %v371, %v737
        %v739 = vpop.f32.mrb[0].mxu0
        %v740 = vadd.f32 %v371, %v739
        %741 = vdwg.mxu0
        %v742 = vld [vmem:[%s5] sm:$0xff]
        %v743 = vld [vmem:[%s5 + $0x8] sm:$0xff]
        %v744 = vld [vmem:[%s5 + $0x10] sm:$0xff]
        %v745 = vld [vmem:[%s5 + $0x18] sm:$0xff]
        %747 = vset.pattern.permute.xlu0 0
        %748 = vperm.xlu0 %747, %v742
        %v749 = vpop.permute.xlu0 %748
        %752 = vset.pattern.permute.xlu0 0
        %753 = vperm.xlu0 %752, %v743
        %v754 = vpop.permute.xlu0 %753
        %757 = vset.pattern.permute.xlu0 0
        %758 = vperm.xlu0 %757, %v744
        %v759 = vpop.permute.xlu0 %758
        %762 = vset.pattern.permute.xlu0 0
        %763 = vperm.xlu0 %762, %v745
        %v764 = vpop.permute.xlu0 %763
        %v766 = vmul.f32 %v453, %v749
        %v767 = vmul.f32 %v455, %v749
        %v768 = vmul.f32 %v542, %v749
        %v769 = vmul.f32 %v544, %v749
        %v770 = vmul.f32 %v631, %v749
        %v771 = vmul.f32 %v633, %v749
        %v772 = vmul.f32 %v720, %v749
        %v773 = vmul.f32 %v722, %v749
        %v774 = vmul.f32 %v459, %v754
        %v775 = vmul.f32 %v461, %v754
        %v776 = vmul.f32 %v548, %v754
        %v777 = vmul.f32 %v550, %v754
        %v778 = vmul.f32 %v637, %v754
        %v779 = vmul.f32 %v639, %v754
        %v780 = vmul.f32 %v726, %v754
        %v781 = vmul.f32 %v728, %v754
        %v782 = vmul.f32 %v465, %v759
        %v783 = vmul.f32 %v467, %v759
        %v784 = vmul.f32 %v554, %v759
        %v785 = vmul.f32 %v556, %v759
        %v786 = vmul.f32 %v643, %v759
        %v787 = vmul.f32 %v645, %v759
        %v788 = vmul.f32 %v732, %v759
        %v789 = vmul.f32 %v734, %v759
        %v790 = vmul.f32 %v471, %v764
        %v791 = vmul.f32 %v473, %v764
        %v792 = vmul.f32 %v560, %v764
        %v793 = vmul.f32 %v562, %v764
        %v794 = vmul.f32 %v649, %v764
        %v795 = vmul.f32 %v651, %v764
        %v796 = vmul.f32 %v738, %v764
        %v797 = vmul.f32 %v740, %v764
        %v798 = vld [vmem:[%s6] sm:$0xff]
        %v799 = vld [vmem:[%s6 + $0x8] sm:$0xff]
        %v800 = vld [vmem:[%s6 + $0x10] sm:$0xff]
        %v801 = vld [vmem:[%s6 + $0x18] sm:$0xff]
        %803 = vset.pattern.permute.xlu0 0
        %804 = vperm.xlu0 %803, %v798
        %v805 = vpop.permute.xlu0 %804
        %808 = vset.pattern.permute.xlu0 0
        %809 = vperm.xlu0 %808, %v799
        %v810 = vpop.permute.xlu0 %809
        %813 = vset.pattern.permute.xlu0 0
        %814 = vperm.xlu0 %813, %v800
        %v815 = vpop.permute.xlu0 %814
        %818 = vset.pattern.permute.xlu0 0
        %819 = vperm.xlu0 %818, %v801
        %v820 = vpop.permute.xlu0 %819
        %v822 = vadd.f32 %v766, %v805
        %v823 = vadd.f32 %v767, %v805
        %v824 = vadd.f32 %v768, %v805
        %v825 = vadd.f32 %v769, %v805
        %v826 = vadd.f32 %v770, %v805
        %v827 = vadd.f32 %v771, %v805
        %v828 = vadd.f32 %v772, %v805
        %v829 = vadd.f32 %v773, %v805
        %v830 = vadd.f32 %v774, %v810
        %v831 = vadd.f32 %v775, %v810
        %v832 = vadd.f32 %v776, %v810
        %v833 = vadd.f32 %v777, %v810
        %v834 = vadd.f32 %v778, %v810
        %v835 = vadd.f32 %v779, %v810
        %v836 = vadd.f32 %v780, %v810
        %v837 = vadd.f32 %v781, %v810
        %v838 = vadd.f32 %v782, %v815
        %v839 = vadd.f32 %v783, %v815
        %v840 = vadd.f32 %v784, %v815
        %v841 = vadd.f32 %v785, %v815
        %v842 = vadd.f32 %v786, %v815
        %v843 = vadd.f32 %v787, %v815
        %v844 = vadd.f32 %v788, %v815
        %v845 = vadd.f32 %v789, %v815
        %v846 = vadd.f32 %v790, %v820
        %v847 = vadd.f32 %v791, %v820
        %v848 = vadd.f32 %v792, %v820
        %v849 = vadd.f32 %v793, %v820
        %v850 = vadd.f32 %v794, %v820
        %v851 = vadd.f32 %v795, %v820
        %v852 = vadd.f32 %v796, %v820
        %v853 = vadd.f32 %v797, %v820
        %vm854 = vcmp.gt.f32.partialorder %v822, 0.0
        %vm855 = vcmp.gt.f32.partialorder %v823, 0.0
        %vm856 = vcmp.gt.f32.partialorder %v824, 0.0
        %vm857 = vcmp.gt.f32.partialorder %v825, 0.0
        %vm858 = vcmp.gt.f32.partialorder %v826, 0.0
        %vm859 = vcmp.gt.f32.partialorder %v827, 0.0
        %vm860 = vcmp.gt.f32.partialorder %v828, 0.0
        %vm861 = vcmp.gt.f32.partialorder %v829, 0.0
        %vm862 = vcmp.gt.f32.partialorder %v830, 0.0
        %vm863 = vcmp.gt.f32.partialorder %v831, 0.0
        %vm864 = vcmp.gt.f32.partialorder %v832, 0.0
        %vm865 = vcmp.gt.f32.partialorder %v833, 0.0
        %vm866 = vcmp.gt.f32.partialorder %v834, 0.0
        %vm867 = vcmp.gt.f32.partialorder %v835, 0.0
        %vm868 = vcmp.gt.f32.partialorder %v836, 0.0
        %vm869 = vcmp.gt.f32.partialorder %v837, 0.0
        %vm870 = vcmp.gt.f32.partialorder %v838, 0.0
        %vm871 = vcmp.gt.f32.partialorder %v839, 0.0
        %vm872 = vcmp.gt.f32.partialorder %v840, 0.0
        %vm873 = vcmp.gt.f32.partialorder %v841, 0.0
        %vm874 = vcmp.gt.f32.partialorder %v842, 0.0
        %vm875 = vcmp.gt.f32.partialorder %v843, 0.0
        %vm876 = vcmp.gt.f32.partialorder %v844, 0.0
        %vm877 = vcmp.gt.f32.partialorder %v845, 0.0
        %vm878 = vcmp.gt.f32.partialorder %v846, 0.0
        %vm879 = vcmp.gt.f32.partialorder %v847, 0.0
        %vm880 = vcmp.gt.f32.partialorder %v848, 0.0
        %vm881 = vcmp.gt.f32.partialorder %v849, 0.0
        %vm882 = vcmp.gt.f32.partialorder %v850, 0.0
        %vm883 = vcmp.gt.f32.partialorder %v851, 0.0
        %vm884 = vcmp.gt.f32.partialorder %v852, 0.0
        %vm885 = vcmp.gt.f32.partialorder %v853, 0.0
        %v886 = vstv %s322
        %v887 = vmul.f32 %v886, %v822
        %v888 = vmul.f32 %v886, %v823
        %v889 = vmul.f32 %v886, %v824
        %v890 = vmul.f32 %v886, %v825
        %v891 = vmul.f32 %v886, %v826
        %v892 = vmul.f32 %v886, %v827
        %v893 = vmul.f32 %v886, %v828
        %v894 = vmul.f32 %v886, %v829
        %v895 = vmul.f32 %v886, %v830
        %v896 = vmul.f32 %v886, %v831
        %v897 = vmul.f32 %v886, %v832
        %v898 = vmul.f32 %v886, %v833
        %v899 = vmul.f32 %v886, %v834
        %v900 = vmul.f32 %v886, %v835
        %v901 = vmul.f32 %v886, %v836
        %v902 = vmul.f32 %v886, %v837
        %v903 = vmul.f32 %v886, %v838
        %v904 = vmul.f32 %v886, %v839
        %v905 = vmul.f32 %v886, %v840
        %v906 = vmul.f32 %v886, %v841
        %v907 = vmul.f32 %v886, %v842
        %v908 = vmul.f32 %v886, %v843
        %v909 = vmul.f32 %v886, %v844
        %v910 = vmul.f32 %v886, %v845
        %v911 = vmul.f32 %v886, %v846
        %v912 = vmul.f32 %v886, %v847
        %v913 = vmul.f32 %v886, %v848
        %v914 = vmul.f32 %v886, %v849
        %v915 = vmul.f32 %v886, %v850
        %v916 = vmul.f32 %v886, %v851
        %v917 = vmul.f32 %v886, %v852
        %v918 = vmul.f32 %v886, %v853
        %v919 = vsel %vm854, %v822, %v887
        %v920 = vsel %vm855, %v823, %v888
        %v921 = vsel %vm856, %v824, %v889
        %v922 = vsel %vm857, %v825, %v890
        %v923 = vsel %vm858, %v826, %v891
        %v924 = vsel %vm859, %v827, %v892
        %v925 = vsel %vm860, %v828, %v893
        %v926 = vsel %vm861, %v829, %v894
        %v927 = vsel %vm862, %v830, %v895
        %v928 = vsel %vm863, %v831, %v896
        %v929 = vsel %vm864, %v832, %v897
        %v930 = vsel %vm865, %v833, %v898
        %v931 = vsel %vm866, %v834, %v899
        %v932 = vsel %vm867, %v835, %v900
        %v933 = vsel %vm868, %v836, %v901
        %v934 = vsel %vm869, %v837, %v902
        %v935 = vsel %vm870, %v838, %v903
        %v936 = vsel %vm871, %v839, %v904
        %v937 = vsel %vm872, %v840, %v905
        %v938 = vsel %vm873, %v841, %v906
        %v939 = vsel %vm874, %v842, %v907
        %v940 = vsel %vm875, %v843, %v908
        %v941 = vsel %vm876, %v844, %v909
        %v942 = vsel %vm877, %v845, %v910
        %v943 = vsel %vm878, %v846, %v911
        %v944 = vsel %vm879, %v847, %v912
        %v945 = vsel %vm880, %v848, %v913
        %v946 = vsel %vm881, %v849, %v914
        %v947 = vsel %vm882, %v850, %v915
        %v948 = vsel %vm883, %v851, %v916
        %v949 = vsel %vm884, %v852, %v917
        %v950 = vsel %vm885, %v853, %v918
        %v951 = vld [vmem:[%s7] sm:$0xff]
        %v952 = vld [vmem:[%s7 + $0x8] sm:$0xff]
        %v953 = vld [vmem:[%s7 + $0x10] sm:$0xff]
        %v954 = vld [vmem:[%s7 + $0x18] sm:$0xff]
        %956 = vset.pattern.permute.xlu0 0
        %957 = vperm.xlu0 %956, %v951
        %v958 = vpop.permute.xlu0 %957
        %961 = vset.pattern.permute.xlu0 0
        %962 = vperm.xlu0 %961, %v952
        %v963 = vpop.permute.xlu0 %962
        %966 = vset.pattern.permute.xlu0 0
        %967 = vperm.xlu0 %966, %v953
        %v968 = vpop.permute.xlu0 %967
        %971 = vset.pattern.permute.xlu0 0
        %972 = vperm.xlu0 %971, %v954
        %v973 = vpop.permute.xlu0 %972
        %v975 = vmul.f32 %v919, %v958
        %v976 = vmul.f32 %v920, %v958
        %v977 = vmul.f32 %v921, %v958
        %v978 = vmul.f32 %v922, %v958
        %v979 = vmul.f32 %v923, %v958
        %v980 = vmul.f32 %v924, %v958
        %v981 = vmul.f32 %v925, %v958
        %v982 = vmul.f32 %v926, %v958
        %v983 = vmul.f32 %v927, %v963
        %v984 = vmul.f32 %v928, %v963
        %v985 = vmul.f32 %v929, %v963
        %v986 = vmul.f32 %v930, %v963
        %v987 = vmul.f32 %v931, %v963
        %v988 = vmul.f32 %v932, %v963
        %v989 = vmul.f32 %v933, %v963
        %v990 = vmul.f32 %v934, %v963
        %v991 = vmul.f32 %v935, %v968
        %v992 = vmul.f32 %v936, %v968
        %v993 = vmul.f32 %v937, %v968
        %v994 = vmul.f32 %v938, %v968
        %v995 = vmul.f32 %v939, %v968
        %v996 = vmul.f32 %v940, %v968
        %v997 = vmul.f32 %v941, %v968
        %v998 = vmul.f32 %v942, %v968
        %v999 = vmul.f32 %v943, %v973
        %v1000 = vmul.f32 %v944, %v973
        %v1001 = vmul.f32 %v945, %v973
        %v1002 = vmul.f32 %v946, %v973
        %v1003 = vmul.f32 %v947, %v973
        %v1004 = vmul.f32 %v948, %v973
        %v1005 = vmul.f32 %v949, %v973
        %v1006 = vmul.f32 %v950, %v973
        %v1007 = vadd.f32 %v975, %v983
        %v1008 = vadd.f32 %v1007, %v991
        %v1009 = vadd.f32 %v1008, %v999
        %v1010 = vrot.slane %v1009, 4
        %v1011 = vadd.f32 %v1009, %v1010
        %v1012 = vrot.slane %v1011, 2
        %v1013 = vadd.f32 %v1011, %v1012
        %v1014 = vrot.slane %v1013, 1
        %v1015 = vadd.f32 %v1013, %v1014
        %v1016 = vadd.f32 %v976, %v984
        %v1017 = vadd.f32 %v1016, %v992
        %v1018 = vadd.f32 %v1017, %v1000
        %v1019 = vrot.slane %v1018, 4
        %v1020 = vadd.f32 %v1018, %v1019
        %v1021 = vrot.slane %v1020, 2
        %v1022 = vadd.f32 %v1020, %v1021
        %v1023 = vrot.slane %v1022, 1
        %v1024 = vadd.f32 %v1022, %v1023
        %v1025 = vadd.f32 %v977, %v985
        %v1026 = vadd.f32 %v1025, %v993
        %v1027 = vadd.f32 %v1026, %v1001
        %v1028 = vrot.slane %v1027, 4
        %v1029 = vadd.f32 %v1027, %v1028
        %v1030 = vrot.slane %v1029, 2
        %v1031 = vadd.f32 %v1029, %v1030
        %v1032 = vrot.slane %v1031, 1
        %v1033 = vadd.f32 %v1031, %v1032
        %v1034 = vadd.f32 %v978, %v986
        %v1035 = vadd.f32 %v1034, %v994
        %v1036 = vadd.f32 %v1035, %v1002
        %v1037 = vrot.slane %v1036, 4
        %v1038 = vadd.f32 %v1036, %v1037
        %v1039 = vrot.slane %v1038, 2
        %v1040 = vadd.f32 %v1038, %v1039
        %v1041 = vrot.slane %v1040, 1
        %v1042 = vadd.f32 %v1040, %v1041
        %v1043 = vadd.f32 %v979, %v987
        %v1044 = vadd.f32 %v1043, %v995
        %v1045 = vadd.f32 %v1044, %v1003
        %v1046 = vrot.slane %v1045, 4
        %v1047 = vadd.f32 %v1045, %v1046
        %v1048 = vrot.slane %v1047, 2
        %v1049 = vadd.f32 %v1047, %v1048
        %v1050 = vrot.slane %v1049, 1
        %v1051 = vadd.f32 %v1049, %v1050
        %v1052 = vadd.f32 %v980, %v988
        %v1053 = vadd.f32 %v1052, %v996
        %v1054 = vadd.f32 %v1053, %v1004
        %v1055 = vrot.slane %v1054, 4
        %v1056 = vadd.f32 %v1054, %v1055
        %v1057 = vrot.slane %v1056, 2
        %v1058 = vadd.f32 %v1056, %v1057
        %v1059 = vrot.slane %v1058, 1
        %v1060 = vadd.f32 %v1058, %v1059
        %v1061 = vadd.f32 %v981, %v989
        %v1062 = vadd.f32 %v1061, %v997
        %v1063 = vadd.f32 %v1062, %v1005
        %v1064 = vrot.slane %v1063, 4
        %v1065 = vadd.f32 %v1063, %v1064
        %v1066 = vrot.slane %v1065, 2
        %v1067 = vadd.f32 %v1065, %v1066
        %v1068 = vrot.slane %v1067, 1
        %v1069 = vadd.f32 %v1067, %v1068
        %v1070 = vadd.f32 %v982, %v990
        %v1071 = vadd.f32 %v1070, %v998
        %v1072 = vadd.f32 %v1071, %v1006
        %v1073 = vrot.slane %v1072, 4
        %v1074 = vadd.f32 %v1072, %v1073
        %v1075 = vrot.slane %v1074, 2
        %v1076 = vadd.f32 %v1074, %v1075
        %v1077 = vrot.slane %v1076, 1
        %v1078 = vadd.f32 %v1076, %v1077
        %v1079 = vstv %s323
        %v1080 = vadd.f32 %v1015, %v1079
        %v1081 = vadd.f32 %v1024, %v1079
        %v1082 = vadd.f32 %v1033, %v1079
        %v1083 = vadd.f32 %v1042, %v1079
        %v1084 = vadd.f32 %v1051, %v1079
        %v1085 = vadd.f32 %v1060, %v1079
        %v1086 = vadd.f32 %v1069, %v1079
        %v1087 = vadd.f32 %v1078, %v1079
        %v1096 = vcombine.low %v1080, %v1081
        %v1097 = vcombine.low %v1082, %v1083
        %v1098 = vcombine.low %v1084, %v1085
        %v1099 = vcombine.low %v1086, %v1087
        %v1101 = vunpack.c.l.s4 1966171168
        %v1102 = vunpack.c.0.s8 %v1101
        %v1103 = vlaneseq
        %v1104 = vshrl.u32 %v1103, 7
        %v1105 = vsub.s32 %v1102, %v1104
        %v1106 = vrot.slane %v1096, %v1105
        %v1108 = vunpack.c.l.s4 1966171168
        %v1109 = vunpack.c.0.s8 %v1108
        %v1110 = vlaneseq
        %v1111 = vshrl.u32 %v1110, 7
        %v1112 = vsub.s32 %v1109, %v1111
        %v1113 = vrot.slane %v1097, %v1112
        %v1115 = vunpack.c.l.s4 1966171168
        %v1116 = vunpack.c.0.s8 %v1115
        %v1117 = vlaneseq
        %v1118 = vshrl.u32 %v1117, 7
        %v1119 = vsub.s32 %v1116, %v1118
        %v1120 = vrot.slane %v1098, %v1119
        %v1122 = vunpack.c.l.s4 1966171168
        %v1123 = vunpack.c.0.s8 %v1122
        %v1124 = vlaneseq
        %v1125 = vshrl.u32 %v1124, 7
        %v1126 = vsub.s32 %v1123, %v1125
        %v1127 = vrot.slane %v1099, %v1126
        %v1128 = vcombine.low %v1106, %v1113
        %v1129 = vcombine.low %v1120, %v1127
        %v1131 = vunpack.c.l.s4 1966171168
        %v1132 = vunpack.c.0.s8 %v1131
        %v1133 = vlaneseq
        %v1134 = vshrl.u32 %v1133, 7
        %v1135 = vsub.s32 %v1132, %v1134
        %v1136 = vrot.slane %v1128, %v1135
        %v1138 = vunpack.c.l.s4 1966171168
        %v1139 = vunpack.c.0.s8 %v1138
        %v1140 = vlaneseq
        %v1141 = vshrl.u32 %v1140, 7
        %v1142 = vsub.s32 %v1139, %v1141
        %v1143 = vrot.slane %v1129, %v1142
        %v1144 = vcombine.low %v1136, %v1143
        %1146 = vst [vmem:[%s313] sm:$0xff] %v1144
        %s1147 = sand.u32 %s204, 1
        %s1148 = scalar_lea.sflag [#allocation3], %s1147
        %s1149 = sand.u32 %s204, 1
        %s1150 = smul.addr %s1149, 8
        %s1151 = scalar_lea.vmem [#allocation5], %s1150
        // Predicated region
        $region57: #{tpu_custom_call.1} parent=51 // pred_check
          %p1152 = pneg %p214
        $region58: #{tpu_custom_call.1} parent=51 // pred_check_branch
          %1154 = sbr.rel (%p1152) target = $region60
        $region59: #{tpu_custom_call.1} parent=51 // pred_region
          %s1155 = smul.u32 8, %s23
          %s1157 = ssub.s32 128, 128
          %1158 = vsyncadd %s1148, %s1157
          %s1159 = smul.addr %s1155, 16
          %s1160 = scalar_lea.hbm %s8, %s1159
          %s1162 = sshll.u32 %s1151, 4
          %s1163 = int_to_ptr.vmem [resolvable:$true] %s1162
          %1165 = dma.vmem_to_hbm [thread:$0]  %s1163, 128, %s1160, %s1148
        $region60: #{tpu_custom_call.1} parent=51 // pred_fallthru
          _
      $region52: #{tpu_custom_call.1} parent=5 // pred_fallthru
        _
      %p1166 = scmp.le.s32.totalorder 2, %s18
      // Predicated region
      $region61: #{tpu_custom_call.1} parent=5 // pred_check
        %p1167 = pneg %p1166
      $region62: #{tpu_custom_call.1} parent=5 // pred_check_branch
        %1169 = sbr.rel (%p1167) target = $region64
      $region63: #{tpu_custom_call.1} parent=5 // pred_region
        %s1170 = ssub.s32 %s18, 2
        // Predicated region
        $region65: #{tpu_custom_call.1} parent=63 // pred_check
          %p1171 = pneg %p220
        $region66: #{tpu_custom_call.1} parent=63 // pred_check_branch
          %1173 = sbr.rel (%p1171) target = $region68
        $region67: #{tpu_custom_call.1} parent=63 // pred_region
          %s1174 = sand.u32 %s205, 1
          %s1175 = scalar_lea.sflag [#allocation3], %s1174
          %s1176 = sand.u32 %s205, 1
          %s1177 = smul.addr %s1176, 8
          %s1178 = scalar_lea.vmem [#allocation5], %s1177
          %1179 = dma.done %s1175, 128
        $region68: #{tpu_custom_call.1} parent=63 // pred_fallthru
          _
      $region64: #{tpu_custom_call.1} parent=5 // pred_fallthru
        _
    $region6: #{tpu_custom_call.1} parent=1 // loop_footer
      %s22 = sadd.s32 1, %s18
    $region7: #{tpu_custom_call.1} parent=1 // loop_footer_branch
      %17 = sbr.rel target = $region3
    $region8: #{tpu_custom_call.1} parent=1 // loop_exit
      _
    %1180 = vsyncpa [#allocation3], 1
    %s1181 = scalar_lea.sflag [#allocation3], 1
    %1182 = vsyncpa %s1181, 1
    %1183 = vsyncpa [#allocation4], 1
    %s1184 = scalar_lea.sflag [#allocation4], 1
    %1185 = vsyncpa %s1184, 1

</llo_original>
